<compile_context>
chip_gen: v6e
topology: v6e:2x2x1
jax: 0.10.0
libtpu: 0.0.40
codegen_flags: <defaults>
</compile_context>

<pallas_src>
import functools

import jax
import jax.numpy as jnp
import numpy as np
from jax.experimental import pallas as pl
from jax.experimental.pallas import tpu as pltpu

NEG_SLOPE = 0.01          # torch.nn.functional.leaky_relu default
H = 32                    # hidden width (h_channels[0] = 32)
F_UP = 128                # feature_upscale out_features
F_CAT = 3 * F_UP          # fc1 in_features = 384
NEG_BIG = 1e30            # additive -inf surrogate for max pooling
TM_TARGET = 256           # dst-row tile for large graphs (sweepable)


def _leaky_relu(x):
    return jnp.where(x > 0, x, NEG_SLOPE * x)


def _round_up(a, b):
    return ((a + b - 1) // b) * b


# --------------------------------------------------------------------------
# Kernels
# --------------------------------------------------------------------------

def sage1_kernel(adj_ref, xwl_ref, root1_ref, out_ref):
    """SAGEConv1 (in=1, sum aggr): w1l folded into the aggregation RHS."""
    agg = jnp.dot(adj_ref[...], xwl_ref[...],
                  preferred_element_type=jnp.float32)          # [TM, H] f32
    out_ref[...] = _leaky_relu(agg + root1_ref[...]).astype(out_ref.dtype)


def sage2_kernel(adj_ref, h_ref, w_ref, b_ref, out_ref, *, tm):
    """SAGEConv2 (sum aggr): agg @ Wl + root @ Wr + b, two dots, f32 accumulate."""
    i = pl.program_id(0)
    agg = jnp.dot(adj_ref[...], h_ref[...],
                  preferred_element_type=jnp.float32)          # [TM, H] f32
    off = pl.multiple_of(i * tm, tm)
    root = h_ref[pl.ds(off, tm), :]                            # [TM, H] bf16
    y = (jnp.dot(agg.astype(jnp.bfloat16), w_ref[0:H, :],
                 preferred_element_type=jnp.float32)
         + jnp.dot(root, w_ref[H:2 * H, :],
                   preferred_element_type=jnp.float32)
         + b_ref[...])
    out_ref[...] = _leaky_relu(y).astype(out_ref.dtype)


def sage3_up_kernel(adj_ref, h_ref, deg_ref, w_ref, b_ref, wu_ref, bu_ref,
                    out_ref, *, tm):
    """SAGEConv3 (mean aggr) fused with feature_upscale Linear(32 -> 128)."""
    i = pl.program_id(0)
    agg = jnp.dot(adj_ref[...], h_ref[...],
                  preferred_element_type=jnp.float32) * deg_ref[...]
    off = pl.multiple_of(i * tm, tm)
    root = h_ref[pl.ds(off, tm), :]
    y = (jnp.dot(agg.astype(jnp.bfloat16), w_ref[0:H, :],
                 preferred_element_type=jnp.float32)
         + jnp.dot(root, w_ref[H:2 * H, :],
                   preferred_element_type=jnp.float32)
         + b_ref[...])
    y = _leaky_relu(y)
    z = jnp.dot(y.astype(jnp.bfloat16), wu_ref[...],
                preferred_element_type=jnp.float32) + bu_ref[...]
    out_ref[...] = _leaky_relu(z).astype(out_ref.dtype)        # [TM, 128] bf16


def pool_head_kernel(h_ref, pool_ref, negT_ref, cnt_inv_ref,
                     wf1_ref, bf1_ref, wf2_ref, bf2_ref,
                     out_ref, acc_add, acc_max, *, num_graphs):
    """Row-tiled reduction: add/mean/max pooling + fc1/leaky/fc2 head."""
    i = pl.program_id(0)

    @pl.when(i == 0)
    def _():
        acc_add[...] = jnp.zeros_like(acc_add)
        acc_max[...] = jnp.full_like(acc_max, -NEG_BIG)

    h_bf = h_ref[...]                                          # [TM, 128] bf16
    acc_add[...] += jnp.dot(pool_ref[...], h_bf,
                            preferred_element_type=jnp.float32)

    hf = h_bf.astype(jnp.float32)
    negT = negT_ref[...]                                       # [TM, B] f32
    # TODO(synk): replace this O(B*TM*128) mask loop with scalar-prefetched
    #             contiguous-segment slices once batch segments are exposed.
    for b in range(num_graphs):                                # static, small
        masked = hf + negT[:, b:b + 1]                         # [TM, 128]
        m = jnp.max(masked, axis=0, keepdims=True)             # [1, 128]
        acc_max[b:b + 1, :] = jnp.maximum(acc_max[b:b + 1, :], m)

    @pl.when(i == pl.num_programs(0) - 1)
    def _():
        cnt_inv = cnt_inv_ref[...]                             # [Bp, 1]
        add_p = acc_add[...]
        mean_p = add_p * cnt_inv
        # zero padded / empty-graph rows so -1e30 never reaches the MLP head
        max_p = jnp.where(cnt_inv > 0.0, acc_max[...], 0.0)
        cat = jnp.concatenate([mean_p, max_p, add_p], axis=1)  # [Bp, 384]
        y = jnp.dot(cat.astype(jnp.bfloat16), wf1_ref[...],
                    preferred_element_type=jnp.float32) + bf1_ref[...]
        y = _leaky_relu(y)
        out_ref[...] = (jnp.dot(y.astype(jnp.bfloat16), wf2_ref[...],
                                preferred_element_type=jnp.float32)
                        + bf2_ref[...])                        # [Bp, 128] f32


# --------------------------------------------------------------------------
# Wrapper
# --------------------------------------------------------------------------

def init_params(key, h=H):
    """Deterministic, torch-Linear-style uniform(-1/sqrt(fan_in)) init."""
    def lin_w(k, fan_in, fan_out):
        s = 1.0 / np.sqrt(fan_in)
        return jax.random.uniform(k, (fan_in, fan_out), jnp.float32, -s, s)

    def lin_b(k, fan_in, fan_out):
        s = 1.0 / np.sqrt(fan_in)
        return jax.random.uniform(k, (1, fan_out), jnp.float32, -s, s)

    ks = jax.random.split(key, 15)
    return [
        lin_w(ks[0], 1, h), lin_w(ks[1], 1, h), lin_b(ks[2], 1, h),      # conv1
        lin_w(ks[3], h, h), lin_w(ks[4], h, h), lin_b(ks[5], h, h),      # conv2
        lin_w(ks[6], h, h), lin_w(ks[7], h, h), lin_b(ks[8], h, h),      # conv3
        lin_w(ks[9], h, F_UP), lin_b(ks[10], h, F_UP),                   # upscale
        lin_w(ks[11], F_CAT, h), lin_b(ks[12], F_CAT, h),                # fc1
        lin_w(ks[13], h, 1), lin_b(ks[14], h, 1),                        # fc2
    ]


def prepare_graph(x, edge_index, batch, num_graphs, n_pad, b_pad):
    """Plain-JAX glue: padded dense adjacency, degree, pooling one-hots."""
    N = x.shape[0]
    src, dst = edge_index[0], edge_index[1]
    adj = jnp.zeros((n_pad, n_pad), jnp.float32).at[dst, src].add(1.0)
    deg = jnp.sum(adj, axis=1, keepdims=True)
    deg_inv = jnp.where(deg > 0, 1.0 / deg, 0.0)

    batch_pad = jnp.full((n_pad,), -1, jnp.int32).at[:N].set(
        batch.astype(jnp.int32))
    # broadcast-compare one-hot (vectorized; no TPU scatter)
    pool = (batch_pad[None, :] ==
            jnp.arange(b_pad, dtype=jnp.int32)[:, None]).astype(jnp.float32)
    cnt = jnp.sum(pool, axis=1, keepdims=True)
    cnt_inv = jnp.where(cnt > 0, 1.0 / cnt, 0.0)
    # column-major additive max-pool mask: 0 for member nodes, -1e30 otherwise
    negT = (jnp.transpose(pool[:num_graphs]) - 1.0) * jnp.float32(NEG_BIG)

    x_pad = jnp.zeros((n_pad, 1), x.dtype).at[:N, :].set(x)
    # adj / pool hold small integer counts & one-hots -> exact in bf16
    return (adj.astype(jnp.bfloat16), deg_inv, pool.astype(jnp.bfloat16),
            cnt_inv, negT, x_pad)


def _vmem_cap_bytes():
    try:
        cap = int(pltpu.get_tpu_info().vmem_capacity_bytes)
    except Exception:
        cap = 64 << 20            # conservative (v7x-sized) fallback
    return (cap * 3) // 4         # leave headroom for compiler scratch


def _vmem_budget(stream_bytes, resident_bytes, cap):
    need = 2 * stream_bytes + resident_bytes + (4 << 20)   # 2x = double buffer
    return int(min(max(need, 32 << 20), cap))


def model_forward(x, edge_index, batch, params, num_graphs):
    (w1l, w1r, b1, w2l, w2r, b2, w3l, w3r, b3,
     wu, bu, wf1, bf1, wf2, bf2) = params

    N = int(x.shape[0])
    if N > TM_TARGET:
        tm = TM_TARGET
        n_pad = _round_up(N, tm)
    else:
        tm = _round_up(max(N, 8), 8)
        n_pad = tm
    grid_rows = n_pad // tm
    b_pad = max(8, _round_up(num_graphs, 8))

    adj, deg_inv, pool, cnt_inv, negT, x_pad = prepare_graph(
        x, edge_index, batch, num_graphs, n_pad, b_pad)

    # conv1 rank-1 linears folded into aggregation RHS / additive root tile
    xwl = (x_pad * w1l).astype(jnp.bfloat16)            # [n_pad, H] bf16
    root1 = x_pad * w1r + b1                            # [n_pad, H] f32

    w2 = jnp.concatenate([w2l, w2r], axis=0).astype(jnp.bfloat16)   # [2H, H]
    w3 = jnp.concatenate([w3l, w3r], axis=0).astype(jnp.bfloat16)
    wu_b = wu.astype(jnp.bfloat16)                      # [H, 128]
    wf1_b = wf1.astype(jnp.bfloat16)                    # [384, H]
    wf2_p = (jnp.zeros((H, F_UP), jnp.float32)
             .at[:, 0:1].set(wf2).astype(jnp.bfloat16)) # fc2 lane-padded
    bf2_p = jnp.zeros((1, F_UP), jnp.float32).at[0, 0].set(bf2[0, 0])

    cap = _vmem_cap_bytes()
    conv_stream = tm * n_pad * 2 + tm * H * 4 + tm * F_UP * 2 + tm * 4
    conv_resident = n_pad * H * 2 + 2 * H * H * 2 + H * F_UP * 2 + (64 << 10)
    conv_vmem = _vmem_budget(conv_stream, conv_resident, cap)
    pool_stream = tm * F_UP * 2 + b_pad * tm * 2 + tm * max(num_graphs, 1) * 4
    pool_resident = (F_CAT * H * 2 + H * F_UP * 2
                     + 3 * b_pad * F_UP * 4 + (64 << 10))
    pool_vmem = _vmem_budget(pool_stream, pool_resident, cap)

    conv_params = pltpu.CompilerParams(
        dimension_semantics=("parallel",), vmem_limit_bytes=conv_vmem)
    pool_params = pltpu.CompilerParams(
        dimension_semantics=("arbitrary",), vmem_limit_bytes=pool_vmem)

    adj_spec = pl.BlockSpec((tm, n_pad), lambda i: (i, 0))
    row = lambda shape: pl.BlockSpec(shape, lambda i: (i, 0))
    full = lambda shape: pl.BlockSpec(shape, lambda i: (0, 0))

    # ---- SAGEConv1 ----
    h1 = pl.pallas_call(
        sage1_kernel,
        grid=(grid_rows,),
        in_specs=[adj_spec, full((n_pad, H)), row((tm, H))],
        out_specs=row((tm, H)),
        out_shape=jax.ShapeDtypeStruct((n_pad, H), jnp.bfloat16),
        compiler_params=conv_params,
        cost_estimate=pl.CostEstimate(
            flops=int(2 * n_pad * n_pad * H), transcendentals=0,
            bytes_accessed=int(n_pad * n_pad * 2 + n_pad * H * (2 + 4 + 2))),
    )(adj, xwl, root1)

    # ---- SAGEConv2 (sum) ----
    h2 = pl.pallas_call(
        functools.partial(sage2_kernel, tm=tm),
        grid=(grid_rows,),
        in_specs=[adj_spec, full((n_pad, H)), full((2 * H, H)), full((1, H))],
        out_specs=row((tm, H)),
        out_shape=jax.ShapeDtypeStruct((n_pad, H), jnp.bfloat16),
        compiler_params=conv_params,
        cost_estimate=pl.CostEstimate(
            flops=int(2 * n_pad * n_pad * H + 4 * n_pad * H * H),
            transcendentals=0,
            bytes_accessed=int(n_pad * n_pad * 2 + 2 * n_pad * H * 2)),
    )(adj, h1, w2, b2)

    # ---- SAGEConv3 (mean) + feature_upscale ----
    h3 = pl.pallas_call(
        functools.partial(sage3_up_kernel, tm=tm),
        grid=(grid_rows,),
        in_specs=[adj_spec, full((n_pad, H)), row((tm, 1)),
                  full((2 * H, H)), full((1, H)),
                  full((H, F_UP)), full((1, F_UP))],
        out_specs=row((tm, F_UP)),
        out_shape=jax.ShapeDtypeStruct((n_pad, F_UP), jnp.bfloat16),
        compiler_params=conv_params,
        cost_estimate=pl.CostEstimate(
            flops=int(2 * n_pad * n_pad * H + 4 * n_pad * H * H
                      + 2 * n_pad * H * F_UP),
            transcendentals=0,
            bytes_accessed=int(n_pad * n_pad * 2 + n_pad * H * 2
                               + n_pad * F_UP * 2 + n_pad * 4)),
    )(adj, h2, deg_inv, w3, b3, wu_b, bu)

    # ---- pooling (add / mean / max) + MLP head ----
    out = pl.pallas_call(
        functools.partial(pool_head_kernel, num_graphs=num_graphs),
        grid=(grid_rows,),
        in_specs=[row((tm, F_UP)),                              # h_up tile
                  pl.BlockSpec((b_pad, tm), lambda i: (0, i)),  # pool col tile
                  row((tm, num_graphs)),                        # -1e30 mask
                  full((b_pad, 1)),                             # cnt_inv
                  full((F_CAT, H)), full((1, H)),               # fc1
                  full((H, F_UP)), full((1, F_UP))],            # fc2 (padded)
        out_specs=full((b_pad, F_UP)),
        out_shape=jax.ShapeDtypeStruct((b_pad, F_UP), jnp.float32),
        scratch_shapes=[pltpu.VMEM((b_pad, F_UP), jnp.float32),
                        pltpu.VMEM((b_pad, F_UP), jnp.float32)],
        compiler_params=pool_params,
        cost_estimate=pl.CostEstimate(
            flops=int(2 * b_pad * n_pad * F_UP + 2 * b_pad * F_CAT * H
                      + 2 * b_pad * H * F_UP),
            transcendentals=0,
            bytes_accessed=int(n_pad * F_UP * 2 + b_pad * n_pad * 2
                               + n_pad * num_graphs * 4 + b_pad * F_UP * 4)),
    )(h3, pool, negT, cnt_inv, wf1_b, bf1, wf2_p, bf2_p)

    return out[:num_graphs, :1]       # strip batch padding + fc2 lane padding


def reference_forward(x, edge_index, batch, params, num_graphs):
    """Pure-JAX f32 reference with the original (PyTorch) math."""
    (w1l, w1r, b1, w2l, w2r, b2, w3l, w3r, b3,
     wu, bu, wf1, bf1, wf2, bf2) = params
    N = x.shape[0]
    src, dst = edge_index[0], edge_index[1]
    adj = jnp.zeros((N, N), jnp.float32).at[dst, src].add(1.0)
    deg = jnp.sum(adj, axis=1, keepdims=True)
    deg_inv = jnp.where(deg > 0, 1.0 / deg, 0.0)
    pool = jnp.zeros((num_graphs, N), jnp.float32).at[batch, jnp.arange(N)].set(1.0)
    cnt = jnp.sum(pool, axis=1, keepdims=True)
    cnt_inv = jnp.where(cnt > 0, 1.0 / cnt, 0.0)

    h = _leaky_relu((adj @ x) @ w1l + x @ w1r + b1)
    h = _leaky_relu((adj @ h) @ w2l + h @ w2r + b2)
    h = _leaky_relu(((adj @ h) * deg_inv) @ w3l + h @ w3r + b3)
    h = _leaky_relu(h @ wu + bu)

    add_pool = pool @ h
    mean_pool = add_pool * cnt_inv
    masked = jnp.where(pool[:, :, None] > 0, h[None, :, :], -NEG_BIG)
    max_pool = jnp.max(masked, axis=1)

    cat = jnp.concatenate([mean_pool, max_pool, add_pool], axis=1)
    y = _leaky_relu(cat @ wf1 + bf1)
    return y @ wf2 + bf2


if __name__ == "__main__":
    key = jax.random.PRNGKey(0)
    k_x, k_src, k_dst, k_params = jax.random.split(key, 4)

    N, E, B = 8, 16, 2
    x = jax.random.normal(k_x, (N, 1), jnp.float32)          # node features, in=1
    src = jax.random.randint(k_src, (E,), 0, N, jnp.int32)
    dst = jax.random.randint(k_dst, (E,), 0, N, jnp.int32)
    edge_index = jnp.stack([src, dst], axis=0)                # [2, E]
    batch = jnp.array([0, 0, 0, 0, 1, 1, 1, 1], jnp.int32)    # 2 graphs of 4 nodes

    params = init_params(k_params)

    out = model_forward(x, edge_index, batch, params, B)
    out = jax.block_until_ready(out)

    ref = reference_forward(x, edge_index, batch, params, B)
    # bf16 matmuls / bf16 inter-layer activations vs pure-f32 reference
    np.testing.assert_allclose(np.asarray(out), np.asarray(ref),
                               rtol=5e-2, atol=5e-2)

    print("KERNEL_OK")
</pallas_src>

<mosaic_0001>
module attributes {stable_mosaic.version = 11 : i64} {
  func.func @sage1_kernel(%arg0: i32, %arg1: memref<8x8xbf16, #tpu.memory_space<vmem>>, %arg2: memref<8x32xbf16, #tpu.memory_space<vmem>>, %arg3: memref<8x32xf32, #tpu.memory_space<vmem>>, %arg4: memref<8x32xbf16, #tpu.memory_space<vmem>>) attributes {dimension_semantics = [#tpu.dimension_semantics<parallel>], iteration_bounds = array<i64: 1>, scalar_prefetch = 0 : i64, scratch_operands = 0 : i64, tpu.core_type = #tpu.core_type<tc>, window_params = [{transform_indices = @transform_0, window_bounds = array<i64: 8, 8>}, {pipeline_mode = #tpu.pipeline_mode<synchronous>, transform_indices = @transform_1, window_bounds = array<i64: 8, 32>}, {transform_indices = @transform_2, window_bounds = array<i64: 8, 32>}, {transform_indices = @transform_3, window_bounds = array<i64: 8, 32>}]} {
    %c0 = arith.constant 0 : index
    %c0_0 = arith.constant 0 : index
    %0 = vector.load %arg1[%c0, %c0_0] : memref<8x8xbf16, #tpu.memory_space<vmem>>, vector<8x8xbf16>
    %c0_1 = arith.constant 0 : index
    %c0_2 = arith.constant 0 : index
    %1 = vector.load %arg2[%c0_1, %c0_2] : memref<8x32xbf16, #tpu.memory_space<vmem>>, vector<8x32xbf16>
    %cst = arith.constant dense<0.000000e+00> : vector<8x32xf32>
    %2 = tpu.matmul %0, %1, %cst {dimension_numbers = #tpu.dot_dimension_numbers<[1], [0], [0], [1], [0, 0, 1, 1], [], []>} : vector<8x8xbf16>, vector<8x32xbf16>, vector<8x32xf32> -> vector<8x32xf32>
    %c0_3 = arith.constant 0 : index
    %c0_4 = arith.constant 0 : index
    %3 = vector.load %arg3[%c0_3, %c0_4] : memref<8x32xf32, #tpu.memory_space<vmem>>, vector<8x32xf32>
    %4 = arith.addf %2, %3 : vector<8x32xf32>
    %cst_5 = arith.constant 0.000000e+00 : f32
    %5 = vector.broadcast %cst_5 : f32 to vector<8x32xf32>
    %6 = arith.cmpf ogt, %4, %5 : vector<8x32xf32>
    %cst_6 = arith.constant 0.00999999977 : f32
    %7 = vector.broadcast %cst_6 : f32 to vector<8x32xf32>
    %8 = arith.mulf %7, %4 : vector<8x32xf32>
    %9 = arith.select %6, %4, %8 : vector<8x32xi1>, vector<8x32xf32>
    %10 = arith.truncf %9 : vector<8x32xf32> to vector<8x32xbf16>
    %c0_7 = arith.constant 0 : index
    %c0_8 = arith.constant 0 : index
    %11 = vector.load %arg4[%c0_7, %c0_8] : memref<8x32xbf16, #tpu.memory_space<vmem>>, vector<8x32xbf16>
    tpu.vector_store %arg4[%c0_7, %c0_8], %10 {strides = array<i32>} : memref<8x32xbf16, #tpu.memory_space<vmem>>, vector<8x32xbf16>,
    return
  }
  func.func @transform_0(%arg0: i32) -> (i32, i32) {
    %c0_i32 = arith.constant 0 : i32
    %c0_i32_0 = arith.constant 0 : i32
    return %arg0, %c0_i32 : i32, i32
  }
  func.func @transform_1(%arg0: i32) -> (i32, i32) {
    %c0_i32 = arith.constant 0 : i32
    %c0_i32_0 = arith.constant 0 : i32
    %c0_i32_1 = arith.constant 0 : i32
    return %c0_i32, %c0_i32_0 : i32, i32
  }
  func.func @transform_2(%arg0: i32) -> (i32, i32) {
    %c0_i32 = arith.constant 0 : i32
    %c0_i32_0 = arith.constant 0 : i32
    return %arg0, %c0_i32 : i32, i32
  }
  func.func @transform_3(%arg0: i32) -> (i32, i32) {
    %c0_i32 = arith.constant 0 : i32
    %c0_i32_0 = arith.constant 0 : i32
    return %arg0, %c0_i32 : i32, i32
  }
}

</mosaic_0001>

<llo_original>
// kernel: tpu_custom_call.1
$region0: #{tpu_custom_call.1}
  #allocation0 [shape = 'u32[]', space=smem, size = 0x4, offset = 0x4, fixed_abs, tag = 'smem constant byte address 0x4 - core index']
  #allocation1 [shape = 'u32[144,128]{1,0:T(1,128)}', space=vmem, size = 0x12000, scoped, tag = 'internal scratch']
  %s0 = inlined_call_operand.hbm [shape: bf16[8,8], index: 0, kind: input, shape index: {}]
  %s1 = inlined_call_operand.hbm [shape: bf16[8,32], index: 1, kind: input, shape index: {}]
  %s2 = inlined_call_operand.hbm [shape: f32[8,32], index: 2, kind: input, shape index: {}]
  %s3 = inlined_call_operand.hbm [shape: bf16[8,32], index: 3, kind: output, shape index: {}]
  %s4 = sld [smem:[#allocation0]]
  $region34: #{tpu_custom_call.1} parent=0
    _
  %s6 = ssub.s32 1, %s4
  %s7 = scalar_select 0, %s6, %s4
  $region1: #{tpu_custom_call.1} parent=0
    #allocation2 [shape = 'u8[2048]{0}', space=vmem, size = 0x800, scoped, tag = 'input window, operand 0, single buffered']
    #allocation3 [shape = 's32[1]{0}', space=sflag, size = 0x4, scoped, tag = 'scoped memory for tpu_custom_call.1']
    #allocation4 [shape = 's32[1]{0}', space=sflag, size = 0x4, scoped, tag = 'scoped memory for tpu_custom_call.1']
    #allocation5 [shape = 'u8[2048]{0}', space=vmem, size = 0x800, scoped, tag = 'input window, operand 1, single buffered']
    #allocation6 [shape = 's32[1]{0}', space=sflag, size = 0x4, scoped, tag = 'scoped memory for tpu_custom_call.1']
    #allocation7 [shape = 'u8[4096]{0}', space=vmem, size = 0x1000, scoped, tag = 'input window, operand 2, single buffered']
    #allocation8 [shape = 'u8[2048]{0}', space=vmem, size = 0x800, scoped, tag = 'output window, operand 0, single buffered']
    %8 = vsyncpa [#allocation3], 0
    %9 = vsyncpa [#allocation6], 0
    %10 = vsyncpa [#allocation4], 0
    // Predicated region
    $region2: #{tpu_custom_call.1} parent=1 // pred_check
      _
    $region3: #{tpu_custom_call.1} parent=1 // pred_check_branch
      %12 = sbr.rel (0) target = $region5
    $region4: #{tpu_custom_call.1} parent=1 // pred_region
      %s14 = ssub.s32 64, 64
      %15 = vsyncadd [#allocation3], %s14
      %s17 = sshll.u32 [#allocation2], 4
      %s18 = int_to_ptr.vmem [resolvable:$true] %s17
      %20 = dma.hbm_to_vmem [thread:$0]  %s0, 64, %s18, [#allocation3]
    $region5: #{tpu_custom_call.1} parent=1 // pred_fallthru
      _
    // Predicated region
    $region6: #{tpu_custom_call.1} parent=1 // pred_check
      _
    $region7: #{tpu_custom_call.1} parent=1 // pred_check_branch
      %22 = sbr.rel (0) target = $region9
    $region8: #{tpu_custom_call.1} parent=1 // pred_region
      %s24 = ssub.s32 64, 64
      %25 = vsyncadd [#allocation6], %s24
      %s27 = sshll.u32 [#allocation5], 4
      %s28 = int_to_ptr.vmem [resolvable:$true] %s27
      %30 = dma.hbm_to_vmem [thread:$0]  %s1, 64, %s28, [#allocation6]
    $region9: #{tpu_custom_call.1} parent=1 // pred_fallthru
      _
    // Predicated region
    $region10: #{tpu_custom_call.1} parent=1 // pred_check
      _
    $region11: #{tpu_custom_call.1} parent=1 // pred_check_branch
      %32 = sbr.rel (0) target = $region13
    $region12: #{tpu_custom_call.1} parent=1 // pred_region
      %s34 = ssub.s32 128, 128
      %35 = vsyncadd [#allocation6], %s34
      %s37 = sshll.u32 [#allocation7], 4
      %s38 = int_to_ptr.vmem [resolvable:$true] %s37
      %40 = dma.hbm_to_vmem [thread:$0]  %s2, 128, %s38, [#allocation6]
    $region13: #{tpu_custom_call.1} parent=1 // pred_fallthru
      _
    // Predicated region
    $region14: #{tpu_custom_call.1} parent=1 // pred_check
      _
    $region15: #{tpu_custom_call.1} parent=1 // pred_check_branch
      %42 = sbr.rel (0) target = $region17
    $region16: #{tpu_custom_call.1} parent=1 // pred_region
      %43 = dma.done [#allocation3], 64
    $region17: #{tpu_custom_call.1} parent=1 // pred_fallthru
      _
    // Predicated region
    $region18: #{tpu_custom_call.1} parent=1 // pred_check
      _
    $region19: #{tpu_custom_call.1} parent=1 // pred_check_branch
      %45 = sbr.rel (0) target = $region21
    $region20: #{tpu_custom_call.1} parent=1 // pred_region
      %46 = dma.done [#allocation6], 64
    $region21: #{tpu_custom_call.1} parent=1 // pred_fallthru
      _
    // Predicated region
    $region22: #{tpu_custom_call.1} parent=1 // pred_check
      _
    $region23: #{tpu_custom_call.1} parent=1 // pred_check_branch
      %48 = sbr.rel (0) target = $region25
    $region24: #{tpu_custom_call.1} parent=1 // pred_region
      %49 = dma.done [#allocation6], 128
    $region25: #{tpu_custom_call.1} parent=1 // pred_fallthru
      _
    %v51 = vld [vmem:[#allocation2] sm:$0xf]
    %v52 = vld [vmem:[#allocation5] sm:$0xf]
    %v53 = vld [vmem:[#allocation7] sm:$0xff]
    %vm54 = vcmask 64512
    %v56 = vsel %vm54, %v51, 0
    %vm58 = vcmask 1043456
    %v60 = vsel %vm58, %v52, 0
    %62 = vmatprep.subr.bf16.mxu0 0
    %63 = vmatpush1.bf16.msra.mxu0 0
    %64 = vmatprep.subr.bf16.mxu0 0
    %65 = vmatpush1.bf16.msra.mxu0 0
    %66 = vmatprep.subr.bf16.mxu0 0
    %67 = vmatpush1.bf16.msra.mxu0 0
    %68 = vmatprep.subr.bf16.mxu0 0
    %69 = vmatpush1.bf16.msra.mxu0 0
    %70 = vmatprep.subr.bf16.mxu0 0
    %71 = vmatpush1.bf16.msra.mxu0 0
    %72 = vmatprep.subr.bf16.mxu0 0
    %73 = vmatpush1.bf16.msra.mxu0 0
    %74 = vmatprep.subr.bf16.mxu0 0
    %75 = vmatpush1.bf16.msra.mxu0 0
    %76 = vmatprep.subr.bf16.mxu0 0
    %77 = vmatpush1.bf16.msra.mxu0 %v60
    %78 = vmatprep.subr.bf16.mxu0 0
    %79 = vmatpush2.bf16.msra.mxu0 0
    %80 = vmatprep.subr.bf16.mxu0 0
    %81 = vmatpush2.bf16.msra.mxu0 0
    %82 = vmatprep.subr.bf16.mxu0 0
    %83 = vmatpush2.bf16.msra.mxu0 0
    %84 = vmatprep.subr.bf16.mxu0 0
    %85 = vmatpush2.bf16.msra.mxu0 0
    %86 = vmatprep.subr.bf16.mxu0 0
    %87 = vmatpush2.bf16.msra.mxu0 0
    %88 = vmatprep.subr.bf16.mxu0 0
    %89 = vmatpush2.bf16.msra.mxu0 0
    %90 = vmatprep.subr.bf16.mxu0 0
    %91 = vmatpush2.bf16.msra.mxu0 0
    %92 = vmatprep.subr.bf16.mxu0 0
    %93 = vmatpush2.bf16.msra.mxu0 0
    %94 = vmatprep.mubr.bf16.mxu0 0
    %95 = vmatmul.mubr.bf16.gmra.mxu0 %v56
    %v96 = vpop.f32.mrf.mxu0
    %v97 = vadd.f32 %v53, %v96
    %v98 = vpop.f32.mrf.mxu0
    %v99 = vpop.f32.mrf.mxu0
    %v100 = vpop.f32.mrf.mxu0
    %101 = vdwg.mxu0
    %vm102 = vcmp.gt.f32.partialorder %v97, 0.0
    %v103 = vmul.f32 %v97, 0.01
    %v104 = vsel %vm102, %v97, %v103
    %v105 = vpack.c.bf16 %v104, %v104
    %vm106 = vcmask 257024
    %107 = vst.msk [vmem:[#allocation8] sm:$0xf] %vm106, %v105
    // Predicated region
    $region26: #{tpu_custom_call.1} parent=1 // pred_check
      _
    $region27: #{tpu_custom_call.1} parent=1 // pred_check_branch
      %109 = sbr.rel (0) target = $region29
    $region28: #{tpu_custom_call.1} parent=1 // pred_region
      %s111 = ssub.s32 64, 64
      %112 = vsyncadd [#allocation4], %s111
      %s114 = sshll.u32 [#allocation8], 4
      %s115 = int_to_ptr.vmem [resolvable:$true] %s114
      %117 = dma.vmem_to_hbm [thread:$0]  %s115, 64, %s3, [#allocation4]
    $region29: #{tpu_custom_call.1} parent=1 // pred_fallthru
      _
    // Predicated region
    $region30: #{tpu_custom_call.1} parent=1 // pred_check
      _
    $region31: #{tpu_custom_call.1} parent=1 // pred_check_branch
      %119 = sbr.rel (0) target = $region33
    $region32: #{tpu_custom_call.1} parent=1 // pred_region
      %120 = dma.done [#allocation4], 64
    $region33: #{tpu_custom_call.1} parent=1 // pred_fallthru
      _
    %121 = vsyncpa [#allocation3], 1
    %122 = vsyncpa [#allocation6], 1
    %123 = vsyncpa [#allocation4], 1

</llo_original>
